<compile_context>
chip_gen: v7x
topology: tpu7x:2x2x1
jax: 0.10.0
libtpu: 0.0.40
codegen_flags: <defaults>
</compile_context>

<pallas_src>
import functools

import jax
import jax.numpy as jnp
from jax.experimental import pallas as pl
from jax.experimental.pallas import tpu as pltpu

MARGIN = 0.05
LAMBDA_FACTOR = 0.1


def _margin_mse_kernel(q_ref, pos_ref, neg_ref, w_ref, out_ref):
    # q_ref / pos_ref / neg_ref: (block_b, H) f32 straight from HBM (no extra pass)
    # w_ref: (H, H) f32, resident across grid steps (constant index_map -> one DMA)
    # out_ref: (3, block_b) f32, lane-dense (batch on the 128-wide lane axis)
    #
    # In-vreg bf16 cast for the MXU operands; f32 accumulation. VPU cast is free
    # relative to the HBM bandwidth this kernel is bound by.
    qw = jnp.dot(
        q_ref[...].astype(jnp.bfloat16),
        w_ref[...].astype(jnp.bfloat16),
        preferred_element_type=jnp.float32,
    )  # (block_b, H) f32

    # pos/neg share the single qw tile; row-reductions land on the (otherwise idle)
    # XLU slot, sigmoid on the EUP slot. All elementwise math stays f32 (v5e-safe).
    pos_logit = jnp.sum(qw * pos_ref[...], axis=-1)  # (block_b,)
    neg_logit = jnp.sum(qw * neg_ref[...], axis=-1)  # (block_b,)
    pos_score = jax.nn.sigmoid(pos_logit)
    neg_score = jax.nn.sigmoid(neg_logit)

    margin_row = jnp.maximum(MARGIN - (pos_score - neg_score), 0.0)  # relu(margin - diff)
    pos_sq = (pos_score - 1.0) ** 2
    neg_sq = neg_score ** 2

    # Single fused store of the whole (3, block_b) slab (one vst, not three vst.msk).
    out_ref[...] = jnp.concatenate(
        [margin_row[None, :], pos_sq[None, :], neg_sq[None, :]], axis=0
    )


def _choose_block_b(B):
    # Prefer large tiles (amortize ~0.35 us/grid-step and small-DMA overhead), but keep
    # at least 2 (ideally an even number of) tiles so dimension_semantics=("parallel",)
    # can balance the grid across v7x's 2 TensorCores.
    candidates = (8192, 4096, 2048, 1024, 512, 256, 128)
    for cand in candidates:
        if cand <= B // 2 and B % cand == 0 and (B // cand) % 2 == 0:
            return cand
    for cand in candidates:
        if cand <= B // 2 and B % cand == 0:
            return cand
    return B  # tiny / indivisible batch: single tile (correct, lane-masked stores)


@functools.partial(jax.jit, static_argnames=("block_b",))
def margin_mse_loss(query, pos, neg, w, *, block_b=None):
    B, H = query.shape
    if block_b is None:
        block_b = _choose_block_b(B)
    assert B % block_b == 0, "batch must be divisible by block_b"
    grid = (B // block_b,)

    # VMEM budget: 3 double-buffered f32 input tiles + resident W + output slab,
    # with 2x headroom; capped at 48 MiB so the same tiling is safe on v7x (64 MiB
    # physical) while still unlocking large block_b on v5e/v6e (128 MiB physical).
    tile_bytes = block_b * H * 4
    vmem_needed = 3 * 2 * tile_bytes + 2 * H * H * 4 + 2 * 3 * block_b * 4
    vmem_limit = int(min(max(2 * vmem_needed, 32 * 1024 * 1024), 48 * 1024 * 1024))

    cost = pl.CostEstimate(
        flops=2 * B * H * H + 4 * B * H,          # bilinear matmul + two row-dots
        transcendentals=2 * B,                    # two sigmoids per example
        bytes_accessed=3 * B * H * 4 + H * H * 4 + 3 * B * 4,
    )

    out = pl.pallas_call(
        _margin_mse_kernel,
        out_shape=jax.ShapeDtypeStruct((3, B), jnp.float32),
        grid_spec=pl.GridSpec(
            grid=grid,
            in_specs=[
                pl.BlockSpec((block_b, H), lambda i: (i, 0)),  # q tile (f32)
                pl.BlockSpec((block_b, H), lambda i: (i, 0)),  # pos tile (f32)
                pl.BlockSpec((block_b, H), lambda i: (i, 0)),  # neg tile (f32)
                pl.BlockSpec((H, H), lambda i: (0, 0)),        # W: resident, DMA'd once
            ],
            out_specs=pl.BlockSpec((3, block_b), lambda i: (0, i)),
        ),
        compiler_params=pltpu.CompilerParams(
            # Batch tiles are independent -> shard the grid across TensorCores.
            dimension_semantics=("parallel",),
            vmem_limit_bytes=vmem_limit,
        ),
        cost_estimate=cost,
    )(query, pos, neg, w)

    margin_loss = out[0]  # (B,) per-example hinge term
    # nn.MSELoss() is a global batch mean -> finalized in the wrapper so the per-tile
    # grid stays numerically exact (and the batch axis can remain "parallel").
    mse_loss = jnp.mean(out[1]) + jnp.mean(out[2])
    return margin_loss + LAMBDA_FACTOR * mse_loss  # (B,), matches PyTorch broadcast


def _reference(query, pos, neg, w):
    # Same numerics as the kernel: bf16 MXU operands with f32 accumulation,
    # everything else f32.
    qw = jnp.dot(query.astype(jnp.bfloat16), w.astype(jnp.bfloat16),
                 preferred_element_type=jnp.float32)
    pos_score = jax.nn.sigmoid(jnp.sum(qw * pos, axis=-1))
    neg_score = jax.nn.sigmoid(jnp.sum(qw * neg, axis=-1))
    margin_loss = jnp.maximum(MARGIN - (pos_score - neg_score), 0.0)
    mse_loss = jnp.mean((pos_score - 1.0) ** 2) + jnp.mean(neg_score ** 2)
    return margin_loss + LAMBDA_FACTOR * mse_loss


if __name__ == "__main__":
    # Small shapes; _choose_block_b(256) -> 128 => grid=(2,) exercises the tiled,
    # two-TensorCore-balanced, lane-dense path.
    B, H = 256, 32

    key = jax.random.PRNGKey(0)
    kq, kp, kn, kw = jax.random.split(key, 4)
    query = jax.random.normal(kq, (B, H), dtype=jnp.float32)
    pos = jax.random.normal(kp, (B, H), dtype=jnp.float32)
    neg = jax.random.normal(kn, (B, H), dtype=jnp.float32)
    # deterministic scorer weights
    w = jax.random.normal(kw, (H, H), dtype=jnp.float32) * (1.0 / jnp.sqrt(H))

    out = jax.block_until_ready(margin_mse_loss(query, pos, neg, w))
    ref = jax.block_until_ready(_reference(query, pos, neg, w))

    assert out.shape == (B,)
    err = float(jnp.max(jnp.abs(out - ref)))
    assert jnp.allclose(out, ref, atol=1e-4, rtol=1e-4), err
    print("KERNEL_OK")
</pallas_src>

<mosaic_0001>
module attributes {stable_mosaic.version = 11 : i64} {
  func.func @_margin_mse_kernel(%arg0: i32, %arg1: memref<128x32xf32, #tpu.memory_space<vmem>>, %arg2: memref<128x32xf32, #tpu.memory_space<vmem>>, %arg3: memref<128x32xf32, #tpu.memory_space<vmem>>, %arg4: memref<32x32xf32, #tpu.memory_space<vmem>>, %arg5: memref<3x128xf32, #tpu.memory_space<vmem>>) attributes {dimension_semantics = [#tpu.dimension_semantics<parallel>], iteration_bounds = array<i64: 2>, scalar_prefetch = 0 : i64, scratch_operands = 0 : i64, tpu.core_type = #tpu.core_type<tc>, window_params = [{transform_indices = @transform_0, window_bounds = array<i64: 128, 32>}, {transform_indices = @transform_1, window_bounds = array<i64: 128, 32>}, {transform_indices = @transform_2, window_bounds = array<i64: 128, 32>}, {pipeline_mode = #tpu.pipeline_mode<synchronous>, transform_indices = @transform_3, window_bounds = array<i64: 32, 32>}, {transform_indices = @transform_4, window_bounds = array<i64: 3, 128>}]} {
    %c0 = arith.constant 0 : index
    %c0_0 = arith.constant 0 : index
    %0 = vector.load %arg1[%c0, %c0_0] : memref<128x32xf32, #tpu.memory_space<vmem>>, vector<128x32xf32>
    %1 = arith.truncf %0 : vector<128x32xf32> to vector<128x32xbf16>
    %c0_1 = arith.constant 0 : index
    %c0_2 = arith.constant 0 : index
    %2 = vector.load %arg4[%c0_1, %c0_2] : memref<32x32xf32, #tpu.memory_space<vmem>>, vector<32x32xf32>
    %3 = arith.truncf %2 : vector<32x32xf32> to vector<32x32xbf16>
    %cst = arith.constant dense<0.000000e+00> : vector<128x32xf32>
    %4 = tpu.matmul %1, %3, %cst {dimension_numbers = #tpu.dot_dimension_numbers<[1], [0], [0], [1], [0, 0, 1, 1], [], []>} : vector<128x32xbf16>, vector<32x32xbf16>, vector<128x32xf32> -> vector<128x32xf32>
    %c0_3 = arith.constant 0 : index
    %c0_4 = arith.constant 0 : index
    %5 = vector.load %arg2[%c0_3, %c0_4] : memref<128x32xf32, #tpu.memory_space<vmem>>, vector<128x32xf32>
    %6 = arith.mulf %4, %5 : vector<128x32xf32>
    %cst_5 = arith.constant dense<0.000000e+00> : vector<128xf32>
    %7 = vector.multi_reduction <add>, %6, %cst_5 [1] : vector<128x32xf32> to vector<128xf32>
    %c0_6 = arith.constant 0 : index
    %c0_7 = arith.constant 0 : index
    %8 = vector.load %arg3[%c0_6, %c0_7] : memref<128x32xf32, #tpu.memory_space<vmem>>, vector<128x32xf32>
    %9 = arith.mulf %4, %8 : vector<128x32xf32>
    %cst_8 = arith.constant dense<0.000000e+00> : vector<128xf32>
    %10 = vector.multi_reduction <add>, %9, %cst_8 [1] : vector<128x32xf32> to vector<128xf32>
    %11 = arith.negf %7 : vector<128xf32>
    %12 = math.exp %11 : vector<128xf32>
    %cst_9 = arith.constant 1.000000e+00 : f32
    %13 = vector.broadcast %cst_9 : f32 to vector<128xf32>
    %14 = arith.addf %13, %12 : vector<128xf32>
    %15 = arith.divf %13, %14 : vector<128xf32>
    %16 = arith.negf %10 : vector<128xf32>
    %17 = math.exp %16 : vector<128xf32>
    %cst_10 = arith.constant 1.000000e+00 : f32
    %18 = vector.broadcast %cst_10 : f32 to vector<128xf32>
    %19 = arith.addf %18, %17 : vector<128xf32>
    %20 = arith.divf %18, %19 : vector<128xf32>
    %21 = arith.subf %15, %20 : vector<128xf32>
    %cst_11 = arith.constant 5.000000e-02 : f32
    %22 = vector.broadcast %cst_11 : f32 to vector<128xf32>
    %23 = arith.subf %22, %21 : vector<128xf32>
    %cst_12 = arith.constant 0.000000e+00 : f32
    %24 = vector.broadcast %cst_12 : f32 to vector<128xf32>
    %25 = arith.maximumf %23, %24 : vector<128xf32>
    %cst_13 = arith.constant 1.000000e+00 : f32
    %26 = vector.broadcast %cst_13 : f32 to vector<128xf32>
    %27 = arith.subf %15, %26 : vector<128xf32>
    %28 = arith.mulf %27, %27 : vector<128xf32>
    %29 = arith.mulf %20, %20 : vector<128xf32>
    %30 = vector.shape_cast %25 : vector<128xf32> to vector<1x128xf32>
    %31 = vector.shape_cast %28 : vector<128xf32> to vector<1x128xf32>
    %32 = vector.shape_cast %29 : vector<128xf32> to vector<1x128xf32>
    %33 = tpu.concatenate %30, %31, %32 in 0 : vector<1x128xf32>, vector<1x128xf32>, vector<1x128xf32> -> vector<3x128xf32>
    %c0_14 = arith.constant 0 : index
    %c0_15 = arith.constant 0 : index
    %34 = vector.load %arg5[%c0_14, %c0_15] : memref<3x128xf32, #tpu.memory_space<vmem>>, vector<3x128xf32>
    tpu.vector_store %arg5[%c0_14, %c0_15], %33 {strides = array<i32>} : memref<3x128xf32, #tpu.memory_space<vmem>>, vector<3x128xf32>,
    return
  }
  func.func @transform_0(%arg0: i32) -> (i32, i32) {
    %c0_i32 = arith.constant 0 : i32
    %c0_i32_0 = arith.constant 0 : i32
    return %arg0, %c0_i32 : i32, i32
  }
  func.func @transform_1(%arg0: i32) -> (i32, i32) {
    %c0_i32 = arith.constant 0 : i32
    %c0_i32_0 = arith.constant 0 : i32
    return %arg0, %c0_i32 : i32, i32
  }
  func.func @transform_2(%arg0: i32) -> (i32, i32) {
    %c0_i32 = arith.constant 0 : i32
    %c0_i32_0 = arith.constant 0 : i32
    return %arg0, %c0_i32 : i32, i32
  }
  func.func @transform_3(%arg0: i32) -> (i32, i32) {
    %c0_i32 = arith.constant 0 : i32
    %c0_i32_0 = arith.constant 0 : i32
    %c0_i32_1 = arith.constant 0 : i32
    return %c0_i32, %c0_i32_0 : i32, i32
  }
  func.func @transform_4(%arg0: i32) -> (i32, i32) {
    %c0_i32 = arith.constant 0 : i32
    %c0_i32_0 = arith.constant 0 : i32
    return %c0_i32, %arg0 : i32, i32
  }
}

</mosaic_0001>

<llo_original>
// kernel: margin_mse_loss.1
$region0: #{margin_mse_loss.1}
  #allocation0 [shape = 'u32[]', space=smem, size = 0x4, offset = 0x4, fixed_abs, tag = 'smem constant byte address 0x4 - core index']
  #allocation1 [shape = 'u32[144,128]{1,0:T(1,128)}', space=vmem, size = 0x12000, scoped, tag = 'internal scratch']
  %s0 = inlined_call_operand.vmem [shape: f32[256,32], index: 0, kind: input, shape index: {}]
  %s1 = inlined_call_operand.vmem [shape: f32[256,32], index: 1, kind: input, shape index: {}]
  %s2 = inlined_call_operand.vmem [shape: f32[256,32], index: 2, kind: input, shape index: {}]
  %s3 = inlined_call_operand.vmem [shape: f32[32,32], index: 3, kind: input, shape index: {}]
  %s4 = inlined_call_operand.vmem [shape: f32[3,256], index: 4, kind: output, shape index: {}]
  %s5 = sld [smem:[#allocation0]]
  $region49: #{margin_mse_loss.1} parent=0
    _
  %s7 = ssub.s32 1, %s5
  %s8 = scalar_select 0, %s7, %s5
  loop: start=0, step=1, limit=4
  $region2: #{margin_mse_loss.1} parent=0 // loop_pre_header
    _
  $region3: #{margin_mse_loss.1} parent=0 // loop_header
    %s10 = sphi 0, %s14
    %p11 = scmp.ge.s32.totalorder %s10, 4
    %s20 = sphi 0, %s22
    %s23 = sphi 0, %s20
    %s24 = sphi 0, %s23
    %s40 = sphi 0, %s24
    %s46 = sphi 0, %s48
    %s49 = sphi 0, %s46
    %s50 = sphi 0, %s49
    %s66 = sphi 0, %s50
    %s72 = sphi 0, %s74
    %s75 = sphi 0, %s72
    %s76 = sphi 0, %s75
    %s92 = sphi 0, %s76
    %s96 = sphi 0, %s96
    %s98 = sphi 0, %s96
    %s99 = sphi 0, %s98
    %s113 = sphi 0, %s99
    %s119 = sphi 0, %s121
    %s122 = sphi 0, %s119
    %s123 = sphi 0, %s122
    %s139 = sphi 0, %s123
  $region4: #{margin_mse_loss.1} parent=0 // loop_header_branch
    %13 = sbr.rel (%p11) target = $region8
  $region5: #{margin_mse_loss.1} parent=0 // loop_body
    %s15 = ssub.s32 %s10, 1
    %s16 = ssub.s32 %s10, 2
    %s17 = sadd.s32 %s10, 1
    %s18 = ssub.s32 %s10, %s17
    %p19 = scmp.eq.s32.totalorder %s18, 0
    %s21 = sadd.s32 %s20, 1
    %s22 = scalar_select %p19, %s20, %s21
    %p25 = pneg %p19
    %p26 = scmp.eq.s32.totalorder %s10, 1
    %p27 = por %p25, %p26
    %p28 = scmp.ne.s32.totalorder %s20, %s23
    %p29 = scmp.eq.s32.totalorder %s10, 0
    %p30 = por %p28, %p29
    %p31 = scmp.ne.s32.totalorder %s20, %s23
    %p32 = scmp.eq.s32.totalorder %s15, 1
    %p33 = por %p31, %p32
    %p34 = scmp.ne.s32.totalorder %s23, %s24
    %p35 = scmp.eq.s32.totalorder %s15, 0
    %p36 = por %p34, %p35
    %p37 = scmp.ne.s32.totalorder %s23, %s24
    %p38 = scmp.eq.s32.totalorder %s16, 1
    %p39 = por %p37, %p38
    %p41 = scmp.ne.s32.totalorder %s24, %s40
    %p42 = scmp.eq.s32.totalorder %s16, 0
    %p43 = por %p41, %p42
    %s44 = ssub.s32 %s10, %s17
    %p45 = scmp.eq.s32.totalorder %s44, 0
    %s47 = sadd.s32 %s46, 1
    %s48 = scalar_select %p45, %s46, %s47
    %p51 = pneg %p45
    %p52 = scmp.eq.s32.totalorder %s10, 1
    %p53 = por %p51, %p52
    %p54 = scmp.ne.s32.totalorder %s46, %s49
    %p55 = scmp.eq.s32.totalorder %s10, 0
    %p56 = por %p54, %p55
    %p57 = scmp.ne.s32.totalorder %s46, %s49
    %p58 = scmp.eq.s32.totalorder %s15, 1
    %p59 = por %p57, %p58
    %p60 = scmp.ne.s32.totalorder %s49, %s50
    %p61 = scmp.eq.s32.totalorder %s15, 0
    %p62 = por %p60, %p61
    %p63 = scmp.ne.s32.totalorder %s49, %s50
    %p64 = scmp.eq.s32.totalorder %s16, 1
    %p65 = por %p63, %p64
    %p67 = scmp.ne.s32.totalorder %s50, %s66
    %p68 = scmp.eq.s32.totalorder %s16, 0
    %p69 = por %p67, %p68
    %s70 = ssub.s32 %s10, %s17
    %p71 = scmp.eq.s32.totalorder %s70, 0
    %s73 = sadd.s32 %s72, 1
    %s74 = scalar_select %p71, %s72, %s73
    %p77 = pneg %p71
    %p78 = scmp.eq.s32.totalorder %s10, 1
    %p79 = por %p77, %p78
    %p80 = scmp.ne.s32.totalorder %s72, %s75
    %p81 = scmp.eq.s32.totalorder %s10, 0
    %p82 = por %p80, %p81
    %p83 = scmp.ne.s32.totalorder %s72, %s75
    %p84 = scmp.eq.s32.totalorder %s15, 1
    %p85 = por %p83, %p84
    %p86 = scmp.ne.s32.totalorder %s75, %s76
    %p87 = scmp.eq.s32.totalorder %s15, 0
    %p88 = por %p86, %p87
    %p89 = scmp.ne.s32.totalorder %s75, %s76
    %p90 = scmp.eq.s32.totalorder %s16, 1
    %p91 = por %p89, %p90
    %p93 = scmp.ne.s32.totalorder %s76, %s92
    %p94 = scmp.eq.s32.totalorder %s16, 0
    %p95 = por %p93, %p94
    %s97 = sadd.s32 %s96, 1
    %p100 = scmp.eq.s32.totalorder %s10, 1
    %p101 = scmp.ne.s32.totalorder %s96, %s98
    %p102 = scmp.eq.s32.totalorder %s10, 0
    %p103 = por %p101, %p102
    %p104 = scmp.ne.s32.totalorder %s96, %s98
    %p105 = scmp.eq.s32.totalorder %s15, 1
    %p106 = por %p104, %p105
    %p107 = scmp.ne.s32.totalorder %s98, %s99
    %p108 = scmp.eq.s32.totalorder %s15, 0
    %p109 = por %p107, %p108
    %p110 = scmp.ne.s32.totalorder %s98, %s99
    %p111 = scmp.eq.s32.totalorder %s16, 1
    %p112 = por %p110, %p111
    %p114 = scmp.ne.s32.totalorder %s99, %s113
    %p115 = scmp.eq.s32.totalorder %s16, 0
    %p116 = por %p114, %p115
    %s117 = ssub.s32 %s10, %s17
    %p118 = scmp.eq.s32.totalorder %s117, 0
    %s120 = sadd.s32 %s119, 1
    %s121 = scalar_select %p118, %s119, %s120
    %p124 = pneg %p118
    %p125 = scmp.eq.s32.totalorder %s10, 1
    %p126 = por %p124, %p125
    %p127 = scmp.ne.s32.totalorder %s119, %s122
    %p128 = scmp.eq.s32.totalorder %s10, 0
    %p129 = por %p127, %p128
    %p130 = scmp.ne.s32.totalorder %s119, %s122
    %p131 = scmp.eq.s32.totalorder %s15, 1
    %p132 = por %p130, %p131
    %p133 = scmp.ne.s32.totalorder %s122, %s123
    %p134 = scmp.eq.s32.totalorder %s15, 0
    %p135 = por %p133, %p134
    %p136 = scmp.ne.s32.totalorder %s122, %s123
    %p137 = scmp.eq.s32.totalorder %s16, 1
    %p138 = por %p136, %p137
    %p140 = scmp.ne.s32.totalorder %s123, %s139
    %p141 = scmp.eq.s32.totalorder %s16, 0
    %p142 = por %p140, %p141
    %p143 = scmp.le.s32.totalorder 1, %s10
    %p144 = scmp.lt.s32.totalorder %s10, 3
    %p145 = pnand %p143, %p144
    %p146 = pneg %p145
    // Predicated region
    $region9: #{margin_mse_loss.1} parent=5 // pred_check
      _
    $region10: #{margin_mse_loss.1} parent=5 // pred_check_branch
      %148 = sbr.rel (%p145) target = $region12
    $region11: #{margin_mse_loss.1} parent=5 // pred_region
      %s149 = ssub.s32 %s10, 1
      // Predicated region
      $region13: #{margin_mse_loss.1} parent=11 // pred_check
        %p150 = pneg %p109
      $region14: #{margin_mse_loss.1} parent=11 // pred_check_branch
        %152 = sbr.rel (%p150) target = $region16
      $region15: #{margin_mse_loss.1} parent=11 // pred_region
        _
      $region16: #{margin_mse_loss.1} parent=11 // pred_fallthru
        _
    $region12: #{margin_mse_loss.1} parent=5 // pred_fallthru
      _
    %p153 = scmp.lt.s32.totalorder %s10, 2
    // Predicated region
    $region17: #{margin_mse_loss.1} parent=5 // pred_check
      %p154 = pneg %p153
    $region18: #{margin_mse_loss.1} parent=5 // pred_check_branch
      %156 = sbr.rel (%p154) target = $region20
    $region19: #{margin_mse_loss.1} parent=5 // pred_region
      // Predicated region
      $region21: #{margin_mse_loss.1} parent=19 // pred_check
        %p157 = pneg %p30
      $region22: #{margin_mse_loss.1} parent=19 // pred_check_branch
        %159 = sbr.rel (%p157) target = $region24
      $region23: #{margin_mse_loss.1} parent=19 // pred_region
        %s160 = smul.u32 16, %s10
        %p161 = scmp.lt.s32.totalorder %s160, 31
        %s162 = scalar_select %p161, %s160, 31
        %s163 = smul.addr %s162, 8
        %s164 = scalar_lea.vmem %s0, %s163
        %s165 = smul.u32 16, %s10
      $region24: #{margin_mse_loss.1} parent=19 // pred_fallthru
        _
      // Predicated region
      $region25: #{margin_mse_loss.1} parent=19 // pred_check
        %p166 = pneg %p56
      $region26: #{margin_mse_loss.1} parent=19 // pred_check_branch
        %168 = sbr.rel (%p166) target = $region28
      $region27: #{margin_mse_loss.1} parent=19 // pred_region
        %s169 = smul.u32 16, %s10
        %p170 = scmp.lt.s32.totalorder %s169, 31
        %s171 = scalar_select %p170, %s169, 31
        %s172 = smul.addr %s171, 8
        %s173 = scalar_lea.vmem %s1, %s172
        %s174 = smul.u32 16, %s10
      $region28: #{margin_mse_loss.1} parent=19 // pred_fallthru
        _
      // Predicated region
      $region29: #{margin_mse_loss.1} parent=19 // pred_check
        %p175 = pneg %p82
      $region30: #{margin_mse_loss.1} parent=19 // pred_check_branch
        %177 = sbr.rel (%p175) target = $region32
      $region31: #{margin_mse_loss.1} parent=19 // pred_region
        %s178 = smul.u32 16, %s10
        %p179 = scmp.lt.s32.totalorder %s178, 31
        %s180 = scalar_select %p179, %s178, 31
        %s181 = smul.addr %s180, 8
        %s182 = scalar_lea.vmem %s2, %s181
        %s183 = smul.u32 16, %s10
      $region32: #{margin_mse_loss.1} parent=19 // pred_fallthru
        _
    $region20: #{margin_mse_loss.1} parent=5 // pred_fallthru
      _
    %p184 = scmp.le.s32.totalorder 1, %s10
    %p185 = scmp.lt.s32.totalorder %s10, 3
    %p186 = pnand %p184, %p185
    %p187 = pneg %p186
    // Predicated region
    $region33: #{margin_mse_loss.1} parent=5 // pred_check
      _
    $region34: #{margin_mse_loss.1} parent=5 // pred_check_branch
      %189 = sbr.rel (%p186) target = $region36
    $region35: #{margin_mse_loss.1} parent=5 // pred_region
      %s190 = ssub.s32 %s10, 1
      %s191 = smul.u32 16, %s15
      %p192 = scmp.lt.s32.totalorder %s191, 31
      %s193 = scalar_select %p192, %s191, 31
      %s194 = smul.addr %s193, 8
      %s195 = scalar_lea.vmem %s0, %s194
      %p196 = pneg %p36
      %p197 = pneg %p33
      %s198 = smul.u32 16, %s15
      %p199 = scmp.lt.s32.totalorder %s198, 31
      %s200 = scalar_select %p199, %s198, 31
      %s201 = smul.addr %s200, 8
      %s202 = scalar_lea.vmem %s1, %s201
      %p203 = pneg %p62
      %p204 = pneg %p59
      %s205 = smul.u32 16, %s15
      %p206 = scmp.lt.s32.totalorder %s205, 31
      %s207 = scalar_select %p206, %s205, 31
      %s208 = smul.addr %s207, 8
      %s209 = scalar_lea.vmem %s2, %s208
      %p210 = pneg %p88
      %p211 = pneg %p85
      %p212 = pneg %p109
      %p213 = pneg %p106
      %p214 = pneg %p135
      %p215 = pneg %p132
      %p216 = scmp.lt.s32.totalorder %s15, 1
      %s217 = scalar_select %p216, %s15, 1
      %s218 = smul.addr %s217, 4
      %s219 = scalar_lea.vmem %s4, %s218
      %s220 = smul.u32 16, %s15
      %p221 = scmp.lt.s32.totalorder %s220, 31
      %s222 = scalar_select %p221, %s220, 31
      %s223 = smul.addr %s222, 8
      %s224 = scalar_lea.vmem %s0, %s223
      %s225 = smul.u32 16, %s15
      %s226 = smul.u32 16, %s15
      %p227 = scmp.lt.s32.totalorder %s226, 31
      %s228 = scalar_select %p227, %s226, 31
      %s229 = smul.addr %s228, 8
      %s230 = scalar_lea.vmem %s1, %s229
      %s231 = smul.u32 16, %s15
      %s232 = smul.u32 16, %s15
      %p233 = scmp.lt.s32.totalorder %s232, 31
      %s234 = scalar_select %p233, %s232, 31
      %s235 = smul.addr %s234, 8
      %s236 = scalar_lea.vmem %s2, %s235
      %s237 = smul.u32 16, %s15
      %p238 = scmp.lt.s32.totalorder %s15, 1
      %s239 = scalar_select %p238, %s15, 1
      %s240 = smul.addr %s239, 4
      %s241 = scalar_lea.vmem %s4, %s240
      %v243 = vld [vmem:[%s224] sm:$0xff]
      %v244 = vld [vmem:[%s224 + $0x8] sm:$0xff]
      %v245 = vld [vmem:[%s224 + $0x10] sm:$0xff]
      %v246 = vld [vmem:[%s224 + $0x18] sm:$0xff]
      %v247 = vld [vmem:[%s224 + $0x20] sm:$0xff]
      %v248 = vld [vmem:[%s224 + $0x28] sm:$0xff]
      %v249 = vld [vmem:[%s224 + $0x30] sm:$0xff]
      %v250 = vld [vmem:[%s224 + $0x38] sm:$0xff]
      %v251 = vld [vmem:[%s224 + $0x40] sm:$0xff]
      %v252 = vld [vmem:[%s224 + $0x48] sm:$0xff]
      %v253 = vld [vmem:[%s224 + $0x50] sm:$0xff]
      %v254 = vld [vmem:[%s224 + $0x58] sm:$0xff]
      %v255 = vld [vmem:[%s224 + $0x60] sm:$0xff]
      %v256 = vld [vmem:[%s224 + $0x68] sm:$0xff]
      %v257 = vld [vmem:[%s224 + $0x70] sm:$0xff]
      %v258 = vld [vmem:[%s224 + $0x78] sm:$0xff]
      %v259 = vpack.c.bf16 %v244, %v243
      %v260 = vpack.c.bf16 %v246, %v245
      %v261 = vpack.c.bf16 %v248, %v247
      %v262 = vpack.c.bf16 %v250, %v249
      %v263 = vpack.c.bf16 %v252, %v251
      %v264 = vpack.c.bf16 %v254, %v253
      %v265 = vpack.c.bf16 %v256, %v255
      %v266 = vpack.c.bf16 %v258, %v257
      %v267 = vld [vmem:[%s3] sm:$0xff]
      %v268 = vld [vmem:[%s3 + $0x8] sm:$0xff]
      %v269 = vld [vmem:[%s3 + $0x10] sm:$0xff]
      %v270 = vld [vmem:[%s3 + $0x18] sm:$0xff]
      %v271 = vpack.c.bf16 %v268, %v267
      %v272 = vpack.c.bf16 %v270, %v269
      %vm273 = vcmask 261120
      %v275 = vsel %vm273, %v259, 0
      %v278 = vsel %vm273, %v260, 0
      %v281 = vsel %vm273, %v261, 0
      %v284 = vsel %vm273, %v262, 0
      %v287 = vsel %vm273, %v263, 0
      %v290 = vsel %vm273, %v264, 0
      %v293 = vsel %vm273, %v265, 0
      %v296 = vsel %vm273, %v266, 0
      %298 = vmatprep.subr.bf16.mxu0 0
      %299 = vmatpush1.bf16.msra.mxu0 %v271
      %300 = vmatprep.subr.bf16.mxu0 0
      %301 = vmatpush1.bf16.msra.mxu0 %v272
      %302 = vmatprep.subr.bf16.mxu0 0
      %303 = vmatpush1.bf16.msra.mxu0 0
      %304 = vmatprep.subr.bf16.mxu0 0
      %305 = vmatpush1.bf16.msra.mxu0 0
      %306 = vmatprep.subr.bf16.mxu0 0
      %307 = vmatpush1.bf16.msra.mxu0 0
      %308 = vmatprep.subr.bf16.mxu0 0
      %309 = vmatpush1.bf16.msra.mxu0 0
      %310 = vmatprep.subr.bf16.mxu0 0
      %311 = vmatpush1.bf16.msra.mxu0 0
      %312 = vmatprep.subr.bf16.mxu0 0
      %313 = vmatpush1.bf16.msra.mxu0 0
      %314 = vmatprep.subr.bf16.mxu0 0
      %315 = vmatpush1.bf16.msra.mxu0 0
      %316 = vmatprep.subr.bf16.mxu0 0
      %317 = vmatpush1.bf16.msra.mxu0 0
      %318 = vmatprep.subr.bf16.mxu0 0
      %319 = vmatpush1.bf16.msra.mxu0 0
      %320 = vmatprep.subr.bf16.mxu0 0
      %321 = vmatpush1.bf16.msra.mxu0 0
      %322 = vmatprep.subr.bf16.mxu0 0
      %323 = vmatpush1.bf16.msra.mxu0 0
      %324 = vmatprep.subr.bf16.mxu0 0
      %325 = vmatpush1.bf16.msra.mxu0 0
      %326 = vmatprep.subr.bf16.mxu0 0
      %327 = vmatpush1.bf16.msra.mxu0 0
      %328 = vmatprep.subr.bf16.mxu0 0
      %329 = vmatpush1.bf16.msra.mxu0 0
      %330 = vmatprep.mubr.bf16.mxu0 0
      %331 = vmatmul.mubr.bf16.gmra.mrb[0].mxu0 %v275
      %v332 = vpop.f32.mrb[0].mxu0
      %v333 = vadd.f32 0.0, %v332
      %v334 = vpop.f32.mrb[0].mxu0
      %v335 = vpop.f32.mrb[0].mxu0
      %v336 = vadd.f32 0.0, %v335
      %v337 = vpop.f32.mrb[0].mxu0
      %338 = vmatprep.mubr.bf16.mxu0 0
      %339 = vmatmul.mubr.bf16.gmra.mrb[0].mxu0 %v278
      %v340 = vpop.f32.mrb[0].mxu0
      %v341 = vadd.f32 0.0, %v340
      %v342 = vpop.f32.mrb[0].mxu0
      %v343 = vpop.f32.mrb[0].mxu0
      %v344 = vadd.f32 0.0, %v343
      %v345 = vpop.f32.mrb[0].mxu0
      %346 = vmatprep.mubr.bf16.mxu0 0
      %347 = vmatmul.mubr.bf16.gmra.mrb[0].mxu0 %v281
      %v348 = vpop.f32.mrb[0].mxu0
      %v349 = vadd.f32 0.0, %v348
      %v350 = vpop.f32.mrb[0].mxu0
      %v351 = vpop.f32.mrb[0].mxu0
      %v352 = vadd.f32 0.0, %v351
      %v353 = vpop.f32.mrb[0].mxu0
      %354 = vmatprep.mubr.bf16.mxu0 0
      %355 = vmatmul.mubr.bf16.gmra.mrb[0].mxu0 %v284
      %v356 = vpop.f32.mrb[0].mxu0
      %v357 = vadd.f32 0.0, %v356
      %v358 = vpop.f32.mrb[0].mxu0
      %v359 = vpop.f32.mrb[0].mxu0
      %v360 = vadd.f32 0.0, %v359
      %v361 = vpop.f32.mrb[0].mxu0
      %362 = vmatprep.mubr.bf16.mxu0 0
      %363 = vmatmul.mubr.bf16.gmra.mrb[0].mxu0 %v287
      %v364 = vpop.f32.mrb[0].mxu0
      %v365 = vadd.f32 0.0, %v364
      %v366 = vpop.f32.mrb[0].mxu0
      %v367 = vpop.f32.mrb[0].mxu0
      %v368 = vadd.f32 0.0, %v367
      %v369 = vpop.f32.mrb[0].mxu0
      %370 = vmatprep.mubr.bf16.mxu0 0
      %371 = vmatmul.mubr.bf16.gmra.mrb[0].mxu0 %v290
      %v372 = vpop.f32.mrb[0].mxu0
      %v373 = vadd.f32 0.0, %v372
      %v374 = vpop.f32.mrb[0].mxu0
      %v375 = vpop.f32.mrb[0].mxu0
      %v376 = vadd.f32 0.0, %v375
      %v377 = vpop.f32.mrb[0].mxu0
      %378 = vmatprep.mubr.bf16.mxu0 0
      %379 = vmatmul.mubr.bf16.gmra.mrb[0].mxu0 %v293
      %v380 = vpop.f32.mrb[0].mxu0
      %v381 = vadd.f32 0.0, %v380
      %v382 = vpop.f32.mrb[0].mxu0
      %v383 = vpop.f32.mrb[0].mxu0
      %v384 = vadd.f32 0.0, %v383
      %v385 = vpop.f32.mrb[0].mxu0
      %386 = vmatprep.mubr.bf16.mxu0 0
      %387 = vmatmul.mubr.bf16.gmra.mrb[0].mxu0 %v296
      %v388 = vpop.f32.mrb[0].mxu0
      %v389 = vadd.f32 0.0, %v388
      %v390 = vpop.f32.mrb[0].mxu0
      %v391 = vpop.f32.mrb[0].mxu0
      %v392 = vadd.f32 0.0, %v391
      %v393 = vpop.f32.mrb[0].mxu0
      %394 = vdwg.mxu0
      %v395 = vld [vmem:[%s230] sm:$0xff]
      %v396 = vld [vmem:[%s230 + $0x8] sm:$0xff]
      %v397 = vld [vmem:[%s230 + $0x10] sm:$0xff]
      %v398 = vld [vmem:[%s230 + $0x18] sm:$0xff]
      %v399 = vld [vmem:[%s230 + $0x20] sm:$0xff]
      %v400 = vld [vmem:[%s230 + $0x28] sm:$0xff]
      %v401 = vld [vmem:[%s230 + $0x30] sm:$0xff]
      %v402 = vld [vmem:[%s230 + $0x38] sm:$0xff]
      %v403 = vld [vmem:[%s230 + $0x40] sm:$0xff]
      %v404 = vld [vmem:[%s230 + $0x48] sm:$0xff]
      %v405 = vld [vmem:[%s230 + $0x50] sm:$0xff]
      %v406 = vld [vmem:[%s230 + $0x58] sm:$0xff]
      %v407 = vld [vmem:[%s230 + $0x60] sm:$0xff]
      %v408 = vld [vmem:[%s230 + $0x68] sm:$0xff]
      %v409 = vld [vmem:[%s230 + $0x70] sm:$0xff]
      %v410 = vld [vmem:[%s230 + $0x78] sm:$0xff]
      %v411 = vmul.f32 %v333, %v395
      %v412 = vmul.f32 %v336, %v396
      %v413 = vmul.f32 %v341, %v397
      %v414 = vmul.f32 %v344, %v398
      %v415 = vmul.f32 %v349, %v399
      %v416 = vmul.f32 %v352, %v400
      %v417 = vmul.f32 %v357, %v401
      %v418 = vmul.f32 %v360, %v402
      %v419 = vmul.f32 %v365, %v403
      %v420 = vmul.f32 %v368, %v404
      %v421 = vmul.f32 %v373, %v405
      %v422 = vmul.f32 %v376, %v406
      %v423 = vmul.f32 %v381, %v407
      %v424 = vmul.f32 %v384, %v408
      %v425 = vmul.f32 %v389, %v409
      %v426 = vmul.f32 %v392, %v410
      %v427 = vsel %vm273, %v411, 0.0
      %428 = vadd.xlane.f32.xlu0 %v427
      %v429 = vpop.xlane.xlu0 %428
      %v430 = vsel %vm273, %v412, 0.0
      %431 = vadd.xlane.f32.xlu0 %v430
      %v432 = vpop.xlane.xlu0 %431
      %v433 = vsel %vm273, %v413, 0.0
      %434 = vadd.xlane.f32.xlu0 %v433
      %v435 = vpop.xlane.xlu0 %434
      %v436 = vsel %vm273, %v414, 0.0
      %437 = vadd.xlane.f32.xlu0 %v436
      %v438 = vpop.xlane.xlu0 %437
      %v439 = vsel %vm273, %v415, 0.0
      %440 = vadd.xlane.f32.xlu0 %v439
      %v441 = vpop.xlane.xlu0 %440
      %v442 = vsel %vm273, %v416, 0.0
      %443 = vadd.xlane.f32.xlu0 %v442
      %v444 = vpop.xlane.xlu0 %443
      %v445 = vsel %vm273, %v417, 0.0
      %446 = vadd.xlane.f32.xlu0 %v445
      %v447 = vpop.xlane.xlu0 %446
      %v448 = vsel %vm273, %v418, 0.0
      %449 = vadd.xlane.f32.xlu0 %v448
      %v450 = vpop.xlane.xlu0 %449
      %v451 = vsel %vm273, %v419, 0.0
      %452 = vadd.xlane.f32.xlu0 %v451
      %v453 = vpop.xlane.xlu0 %452
      %v454 = vsel %vm273, %v420, 0.0
      %455 = vadd.xlane.f32.xlu0 %v454
      %v456 = vpop.xlane.xlu0 %455
      %v457 = vsel %vm273, %v421, 0.0
      %458 = vadd.xlane.f32.xlu0 %v457
      %v459 = vpop.xlane.xlu0 %458
      %v460 = vsel %vm273, %v422, 0.0
      %461 = vadd.xlane.f32.xlu0 %v460
      %v462 = vpop.xlane.xlu0 %461
      %v463 = vsel %vm273, %v423, 0.0
      %464 = vadd.xlane.f32.xlu0 %v463
      %v465 = vpop.xlane.xlu0 %464
      %v466 = vsel %vm273, %v424, 0.0
      %467 = vadd.xlane.f32.xlu0 %v466
      %v468 = vpop.xlane.xlu0 %467
      %v469 = vsel %vm273, %v425, 0.0
      %470 = vadd.xlane.f32.xlu0 %v469
      %v471 = vpop.xlane.xlu0 %470
      %v472 = vsel %vm273, %v426, 0.0
      %473 = vadd.xlane.f32.xlu0 %v472
      %v474 = vpop.xlane.xlu0 %473
      %v475 = vld [vmem:[%s236] sm:$0xff]
      %v476 = vld [vmem:[%s236 + $0x8] sm:$0xff]
      %v477 = vld [vmem:[%s236 + $0x10] sm:$0xff]
      %v478 = vld [vmem:[%s236 + $0x18] sm:$0xff]
      %v479 = vld [vmem:[%s236 + $0x20] sm:$0xff]
      %v480 = vld [vmem:[%s236 + $0x28] sm:$0xff]
      %v481 = vld [vmem:[%s236 + $0x30] sm:$0xff]
      %v482 = vld [vmem:[%s236 + $0x38] sm:$0xff]
      %v483 = vld [vmem:[%s236 + $0x40] sm:$0xff]
      %v484 = vld [vmem:[%s236 + $0x48] sm:$0xff]
      %v485 = vld [vmem:[%s236 + $0x50] sm:$0xff]
      %v486 = vld [vmem:[%s236 + $0x58] sm:$0xff]
      %v487 = vld [vmem:[%s236 + $0x60] sm:$0xff]
      %v488 = vld [vmem:[%s236 + $0x68] sm:$0xff]
      %v489 = vld [vmem:[%s236 + $0x70] sm:$0xff]
      %v490 = vld [vmem:[%s236 + $0x78] sm:$0xff]
      %v491 = vmul.f32 %v333, %v475
      %v492 = vmul.f32 %v336, %v476
      %v493 = vmul.f32 %v341, %v477
      %v494 = vmul.f32 %v344, %v478
      %v495 = vmul.f32 %v349, %v479
      %v496 = vmul.f32 %v352, %v480
      %v497 = vmul.f32 %v357, %v481
      %v498 = vmul.f32 %v360, %v482
      %v499 = vmul.f32 %v365, %v483
      %v500 = vmul.f32 %v368, %v484
      %v501 = vmul.f32 %v373, %v485
      %v502 = vmul.f32 %v376, %v486
      %v503 = vmul.f32 %v381, %v487
      %v504 = vmul.f32 %v384, %v488
      %v505 = vmul.f32 %v389, %v489
      %v506 = vmul.f32 %v392, %v490
      %v507 = vsel %vm273, %v491, 0.0
      %508 = vadd.xlane.f32.xlu0 %v507
      %v509 = vpop.xlane.xlu0 %508
      %v510 = vsel %vm273, %v492, 0.0
      %511 = vadd.xlane.f32.xlu0 %v510
      %v512 = vpop.xlane.xlu0 %511
      %v513 = vsel %vm273, %v493, 0.0
      %514 = vadd.xlane.f32.xlu0 %v513
      %v515 = vpop.xlane.xlu0 %514
      %v516 = vsel %vm273, %v494, 0.0
      %517 = vadd.xlane.f32.xlu0 %v516
      %v518 = vpop.xlane.xlu0 %517
      %v519 = vsel %vm273, %v495, 0.0
      %520 = vadd.xlane.f32.xlu0 %v519
      %v521 = vpop.xlane.xlu0 %520
      %v522 = vsel %vm273, %v496, 0.0
      %523 = vadd.xlane.f32.xlu0 %v522
      %v524 = vpop.xlane.xlu0 %523
      %v525 = vsel %vm273, %v497, 0.0
      %526 = vadd.xlane.f32.xlu0 %v525
      %v527 = vpop.xlane.xlu0 %526
      %v528 = vsel %vm273, %v498, 0.0
      %529 = vadd.xlane.f32.xlu0 %v528
      %v530 = vpop.xlane.xlu0 %529
      %v531 = vsel %vm273, %v499, 0.0
      %532 = vadd.xlane.f32.xlu0 %v531
      %v533 = vpop.xlane.xlu0 %532
      %v534 = vsel %vm273, %v500, 0.0
      %535 = vadd.xlane.f32.xlu0 %v534
      %v536 = vpop.xlane.xlu0 %535
      %v537 = vsel %vm273, %v501, 0.0
      %538 = vadd.xlane.f32.xlu0 %v537
      %v539 = vpop.xlane.xlu0 %538
      %v540 = vsel %vm273, %v502, 0.0
      %541 = vadd.xlane.f32.xlu0 %v540
      %v542 = vpop.xlane.xlu0 %541
      %v543 = vsel %vm273, %v503, 0.0
      %544 = vadd.xlane.f32.xlu0 %v543
      %v545 = vpop.xlane.xlu0 %544
      %v546 = vsel %vm273, %v504, 0.0
      %547 = vadd.xlane.f32.xlu0 %v546
      %v548 = vpop.xlane.xlu0 %547
      %v549 = vsel %vm273, %v505, 0.0
      %550 = vadd.xlane.f32.xlu0 %v549
      %v551 = vpop.xlane.xlu0 %550
      %v552 = vsel %vm273, %v506, 0.0
      %553 = vadd.xlane.f32.xlu0 %v552
      %v554 = vpop.xlane.xlu0 %553
      %v555 = vxor.u32 %v429, 2147483648
      %v556 = vxor.u32 %v432, 2147483648
      %v557 = vxor.u32 %v435, 2147483648
      %v558 = vxor.u32 %v438, 2147483648
      %v559 = vxor.u32 %v441, 2147483648
      %v560 = vxor.u32 %v444, 2147483648
      %v561 = vxor.u32 %v447, 2147483648
      %v562 = vxor.u32 %v450, 2147483648
      %v563 = vxor.u32 %v453, 2147483648
      %v564 = vxor.u32 %v456, 2147483648
      %v565 = vxor.u32 %v459, 2147483648
      %v566 = vxor.u32 %v462, 2147483648
      %v567 = vxor.u32 %v465, 2147483648
      %v568 = vxor.u32 %v468, 2147483648
      %v569 = vxor.u32 %v471, 2147483648
      %v570 = vxor.u32 %v474, 2147483648
      %v571 = vmul.f32 %v555, 1.442695
      %v572 = vpow.pop %v571
      %v573 = vmul.f32 %v556, 1.442695
      %v574 = vpow.pop %v573
      %v575 = vmul.f32 %v557, 1.442695
      %v576 = vpow.pop %v575
      %v577 = vmul.f32 %v558, 1.442695
      %v578 = vpow.pop %v577
      %v579 = vmul.f32 %v559, 1.442695
      %v580 = vpow.pop %v579
      %v581 = vmul.f32 %v560, 1.442695
      %v582 = vpow.pop %v581
      %v583 = vmul.f32 %v561, 1.442695
      %v584 = vpow.pop %v583
      %v585 = vmul.f32 %v562, 1.442695
      %v586 = vpow.pop %v585
      %v587 = vmul.f32 %v563, 1.442695
      %v588 = vpow.pop %v587
      %v589 = vmul.f32 %v564, 1.442695
      %v590 = vpow.pop %v589
      %v591 = vmul.f32 %v565, 1.442695
      %v592 = vpow.pop %v591
      %v593 = vmul.f32 %v566, 1.442695
      %v594 = vpow.pop %v593
      %v595 = vmul.f32 %v567, 1.442695
      %v596 = vpow.pop %v595
      %v597 = vmul.f32 %v568, 1.442695
      %v598 = vpow.pop %v597
      %v599 = vmul.f32 %v569, 1.442695
      %v600 = vpow.pop %v599
      %v601 = vmul.f32 %v570, 1.442695
      %v602 = vpow.pop %v601
      %v603 = vadd.f32 %v572, 1.0
      %v604 = vadd.f32 %v574, 1.0
      %v605 = vadd.f32 %v576, 1.0
      %v606 = vadd.f32 %v578, 1.0
      %v607 = vadd.f32 %v580, 1.0
      %v608 = vadd.f32 %v582, 1.0
      %v609 = vadd.f32 %v584, 1.0
      %v610 = vadd.f32 %v586, 1.0
      %v611 = vadd.f32 %v588, 1.0
      %v612 = vadd.f32 %v590, 1.0
      %v613 = vadd.f32 %v592, 1.0
      %v614 = vadd.f32 %v594, 1.0
      %v615 = vadd.f32 %v596, 1.0
      %v616 = vadd.f32 %v598, 1.0
      %v617 = vadd.f32 %v600, 1.0
      %v618 = vadd.f32 %v602, 1.0
      %v619 = vrcp.pop %v603
      %v620 = vmul.f32 1.0, %v619
      %v621 = vrcp.pop %v604
      %v622 = vmul.f32 1.0, %v621
      %v623 = vrcp.pop %v605
      %v624 = vmul.f32 1.0, %v623
      %v625 = vrcp.pop %v606
      %v626 = vmul.f32 1.0, %v625
      %v627 = vrcp.pop %v607
      %v628 = vmul.f32 1.0, %v627
      %v629 = vrcp.pop %v608
      %v630 = vmul.f32 1.0, %v629
      %v631 = vrcp.pop %v609
      %v632 = vmul.f32 1.0, %v631
      %v633 = vrcp.pop %v610
      %v634 = vmul.f32 1.0, %v633
      %v635 = vrcp.pop %v611
      %v636 = vmul.f32 1.0, %v635
      %v637 = vrcp.pop %v612
      %v638 = vmul.f32 1.0, %v637
      %v639 = vrcp.pop %v613
      %v640 = vmul.f32 1.0, %v639
      %v641 = vrcp.pop %v614
      %v642 = vmul.f32 1.0, %v641
      %v643 = vrcp.pop %v615
      %v644 = vmul.f32 1.0, %v643
      %v645 = vrcp.pop %v616
      %v646 = vmul.f32 1.0, %v645
      %v647 = vrcp.pop %v617
      %v648 = vmul.f32 1.0, %v647
      %v649 = vrcp.pop %v618
      %v650 = vmul.f32 1.0, %v649
      %v651 = vxor.u32 %v509, 2147483648
      %v652 = vxor.u32 %v512, 2147483648
      %v653 = vxor.u32 %v515, 2147483648
      %v654 = vxor.u32 %v518, 2147483648
      %v655 = vxor.u32 %v521, 2147483648
      %v656 = vxor.u32 %v524, 2147483648
      %v657 = vxor.u32 %v527, 2147483648
      %v658 = vxor.u32 %v530, 2147483648
      %v659 = vxor.u32 %v533, 2147483648
      %v660 = vxor.u32 %v536, 2147483648
      %v661 = vxor.u32 %v539, 2147483648
      %v662 = vxor.u32 %v542, 2147483648
      %v663 = vxor.u32 %v545, 2147483648
      %v664 = vxor.u32 %v548, 2147483648
      %v665 = vxor.u32 %v551, 2147483648
      %v666 = vxor.u32 %v554, 2147483648
      %v667 = vmul.f32 %v651, 1.442695
      %v668 = vpow.pop %v667
      %v669 = vmul.f32 %v652, 1.442695
      %v670 = vpow.pop %v669
      %v671 = vmul.f32 %v653, 1.442695
      %v672 = vpow.pop %v671
      %v673 = vmul.f32 %v654, 1.442695
      %v674 = vpow.pop %v673
      %v675 = vmul.f32 %v655, 1.442695
      %v676 = vpow.pop %v675
      %v677 = vmul.f32 %v656, 1.442695
      %v678 = vpow.pop %v677
      %v679 = vmul.f32 %v657, 1.442695
      %v680 = vpow.pop %v679
      %v681 = vmul.f32 %v658, 1.442695
      %v682 = vpow.pop %v681
      %v683 = vmul.f32 %v659, 1.442695
      %v684 = vpow.pop %v683
      %v685 = vmul.f32 %v660, 1.442695
      %v686 = vpow.pop %v685
      %v687 = vmul.f32 %v661, 1.442695
      %v688 = vpow.pop %v687
      %v689 = vmul.f32 %v662, 1.442695
      %v690 = vpow.pop %v689
      %v691 = vmul.f32 %v663, 1.442695
      %v692 = vpow.pop %v691
      %v693 = vmul.f32 %v664, 1.442695
      %v694 = vpow.pop %v693
      %v695 = vmul.f32 %v665, 1.442695
      %v696 = vpow.pop %v695
      %v697 = vmul.f32 %v666, 1.442695
      %v698 = vpow.pop %v697
      %v699 = vadd.f32 %v668, 1.0
      %v700 = vadd.f32 %v670, 1.0
      %v701 = vadd.f32 %v672, 1.0
      %v702 = vadd.f32 %v674, 1.0
      %v703 = vadd.f32 %v676, 1.0
      %v704 = vadd.f32 %v678, 1.0
      %v705 = vadd.f32 %v680, 1.0
      %v706 = vadd.f32 %v682, 1.0
      %v707 = vadd.f32 %v684, 1.0
      %v708 = vadd.f32 %v686, 1.0
      %v709 = vadd.f32 %v688, 1.0
      %v710 = vadd.f32 %v690, 1.0
      %v711 = vadd.f32 %v692, 1.0
      %v712 = vadd.f32 %v694, 1.0
      %v713 = vadd.f32 %v696, 1.0
      %v714 = vadd.f32 %v698, 1.0
      %v715 = vrcp.pop %v699
      %v716 = vmul.f32 1.0, %v715
      %v717 = vrcp.pop %v700
      %v718 = vmul.f32 1.0, %v717
      %v719 = vrcp.pop %v701
      %v720 = vmul.f32 1.0, %v719
      %v721 = vrcp.pop %v702
      %v722 = vmul.f32 1.0, %v721
      %v723 = vrcp.pop %v703
      %v724 = vmul.f32 1.0, %v723
      %v725 = vrcp.pop %v704
      %v726 = vmul.f32 1.0, %v725
      %v727 = vrcp.pop %v705
      %v728 = vmul.f32 1.0, %v727
      %v729 = vrcp.pop %v706
      %v730 = vmul.f32 1.0, %v729
      %v731 = vrcp.pop %v707
      %v732 = vmul.f32 1.0, %v731
      %v733 = vrcp.pop %v708
      %v734 = vmul.f32 1.0, %v733
      %v735 = vrcp.pop %v709
      %v736 = vmul.f32 1.0, %v735
      %v737 = vrcp.pop %v710
      %v738 = vmul.f32 1.0, %v737
      %v739 = vrcp.pop %v711
      %v740 = vmul.f32 1.0, %v739
      %v741 = vrcp.pop %v712
      %v742 = vmul.f32 1.0, %v741
      %v743 = vrcp.pop %v713
      %v744 = vmul.f32 1.0, %v743
      %v745 = vrcp.pop %v714
      %v746 = vmul.f32 1.0, %v745
      %v747 = vsub.f32 %v620, %v716
      %v748 = vsub.f32 %v622, %v718
      %v749 = vsub.f32 %v624, %v720
      %v750 = vsub.f32 %v626, %v722
      %v751 = vsub.f32 %v628, %v724
      %v752 = vsub.f32 %v630, %v726
      %v753 = vsub.f32 %v632, %v728
      %v754 = vsub.f32 %v634, %v730
      %v755 = vsub.f32 %v636, %v732
      %v756 = vsub.f32 %v638, %v734
      %v757 = vsub.f32 %v640, %v736
      %v758 = vsub.f32 %v642, %v738
      %v759 = vsub.f32 %v644, %v740
      %v760 = vsub.f32 %v646, %v742
      %v761 = vsub.f32 %v648, %v744
      %v762 = vsub.f32 %v650, %v746
      %v763 = vsub.f32 0.05, %v747
      %v764 = vsub.f32 0.05, %v748
      %v765 = vsub.f32 0.05, %v749
      %v766 = vsub.f32 0.05, %v750
      %v767 = vsub.f32 0.05, %v751
      %v768 = vsub.f32 0.05, %v752
      %v769 = vsub.f32 0.05, %v753
      %v770 = vsub.f32 0.05, %v754
      %v771 = vsub.f32 0.05, %v755
      %v772 = vsub.f32 0.05, %v756
      %v773 = vsub.f32 0.05, %v757
      %v774 = vsub.f32 0.05, %v758
      %v775 = vsub.f32 0.05, %v759
      %v776 = vsub.f32 0.05, %v760
      %v777 = vsub.f32 0.05, %v761
      %v778 = vsub.f32 0.05, %v762
      %v779 = vmax.f32 %v763, 0.0
      %v780 = vmax.f32 %v764, 0.0
      %v781 = vmax.f32 %v765, 0.0
      %v782 = vmax.f32 %v766, 0.0
      %v783 = vmax.f32 %v767, 0.0
      %v784 = vmax.f32 %v768, 0.0
      %v785 = vmax.f32 %v769, 0.0
      %v786 = vmax.f32 %v770, 0.0
      %v787 = vmax.f32 %v771, 0.0
      %v788 = vmax.f32 %v772, 0.0
      %v789 = vmax.f32 %v773, 0.0
      %v790 = vmax.f32 %v774, 0.0
      %v791 = vmax.f32 %v775, 0.0
      %v792 = vmax.f32 %v776, 0.0
      %v793 = vmax.f32 %v777, 0.0
      %v794 = vmax.f32 %v778, 0.0
      %v795 = vsub.f32 %v620, 1.0
      %v796 = vsub.f32 %v622, 1.0
      %v797 = vsub.f32 %v624, 1.0
      %v798 = vsub.f32 %v626, 1.0
      %v799 = vsub.f32 %v628, 1.0
      %v800 = vsub.f32 %v630, 1.0
      %v801 = vsub.f32 %v632, 1.0
      %v802 = vsub.f32 %v634, 1.0
      %v803 = vsub.f32 %v636, 1.0
      %v804 = vsub.f32 %v638, 1.0
      %v805 = vsub.f32 %v640, 1.0
      %v806 = vsub.f32 %v642, 1.0
      %v807 = vsub.f32 %v644, 1.0
      %v808 = vsub.f32 %v646, 1.0
      %v809 = vsub.f32 %v648, 1.0
      %v810 = vsub.f32 %v650, 1.0
      %v811 = vmul.f32 %v795, %v795
      %v812 = vmul.f32 %v796, %v796
      %v813 = vmul.f32 %v797, %v797
      %v814 = vmul.f32 %v798, %v798
      %v815 = vmul.f32 %v799, %v799
      %v816 = vmul.f32 %v800, %v800
      %v817 = vmul.f32 %v801, %v801
      %v818 = vmul.f32 %v802, %v802
      %v819 = vmul.f32 %v803, %v803
      %v820 = vmul.f32 %v804, %v804
      %v821 = vmul.f32 %v805, %v805
      %v822 = vmul.f32 %v806, %v806
      %v823 = vmul.f32 %v807, %v807
      %v824 = vmul.f32 %v808, %v808
      %v825 = vmul.f32 %v809, %v809
      %v826 = vmul.f32 %v810, %v810
      %v827 = vmul.f32 %v716, %v716
      %v828 = vmul.f32 %v718, %v718
      %v829 = vmul.f32 %v720, %v720
      %v830 = vmul.f32 %v722, %v722
      %v831 = vmul.f32 %v724, %v724
      %v832 = vmul.f32 %v726, %v726
      %v833 = vmul.f32 %v728, %v728
      %v834 = vmul.f32 %v730, %v730
      %v835 = vmul.f32 %v732, %v732
      %v836 = vmul.f32 %v734, %v734
      %v837 = vmul.f32 %v736, %v736
      %v838 = vmul.f32 %v738, %v738
      %v839 = vmul.f32 %v740, %v740
      %v840 = vmul.f32 %v742, %v742
      %v841 = vmul.f32 %v744, %v744
      %v842 = vmul.f32 %v746, %v746
      %v859 = vlaneseq
      %v860 = vand.u32 %v859, 127
      %v861 = vlaneseq
      %v862 = vshrl.u32 %v861, 7
      %v863 = vsub.s32 %v860, %v862
      %v864 = vrot.slane %v779, %v863
      %v865 = vadd.s32 %v860, 4294967288
      %v866 = vlaneseq
      %v867 = vshrl.u32 %v866, 7
      %v868 = vsub.s32 %v865, %v867
      %v869 = vrot.slane %v780, %v868
      %vm870 = vcmask 130112
      %v871 = vsel %vm870, %v869, %v864
      %v872 = vadd.s32 %v860, 4294967280
      %v873 = vlaneseq
      %v874 = vshrl.u32 %v873, 7
      %v875 = vsub.s32 %v872, %v874
      %v876 = vrot.slane %v781, %v875
      %vm877 = vcmask 195712
      %v878 = vsel %vm877, %v876, %v871
      %v879 = vadd.s32 %v860, 4294967272
      %v880 = vlaneseq
      %v881 = vshrl.u32 %v880, 7
      %v882 = vsub.s32 %v879, %v881
      %v883 = vrot.slane %v782, %v882
      %vm884 = vcmask 261312
      %v885 = vsel %vm884, %v883, %v878
      %v886 = vadd.s32 %v860, 4294967264
      %v887 = vlaneseq
      %v888 = vshrl.u32 %v887, 7
      %v889 = vsub.s32 %v886, %v888
      %v890 = vrot.slane %v783, %v889
      %vm891 = vcmask 326912
      %v892 = vsel %vm891, %v890, %v885
      %v893 = vadd.s32 %v860, 4294967256
      %v894 = vlaneseq
      %v895 = vshrl.u32 %v894, 7
      %v896 = vsub.s32 %v893, %v895
      %v897 = vrot.slane %v784, %v896
      %vm898 = vcmask 392512
      %v899 = vsel %vm898, %v897, %v892
      %v900 = vadd.s32 %v860, 4294967248
      %v901 = vlaneseq
      %v902 = vshrl.u32 %v901, 7
      %v903 = vsub.s32 %v900, %v902
      %v904 = vrot.slane %v785, %v903
      %vm905 = vcmask 458112
      %v906 = vsel %vm905, %v904, %v899
      %v907 = vadd.s32 %v860, 4294967240
      %v908 = vlaneseq
      %v909 = vshrl.u32 %v908, 7
      %v910 = vsub.s32 %v907, %v909
      %v911 = vrot.slane %v786, %v910
      %vm912 = vcmask 523712
      %v913 = vsel %vm912, %v911, %v906
      %v914 = vadd.s32 %v860, 4294967232
      %v915 = vlaneseq
      %v916 = vshrl.u32 %v915, 7
      %v917 = vsub.s32 %v914, %v916
      %v918 = vrot.slane %v787, %v917
      %vm919 = vcmask 589312
      %v920 = vsel %vm919, %v918, %v913
      %v921 = vadd.s32 %v860, 4294967224
      %v922 = vlaneseq
      %v923 = vshrl.u32 %v922, 7
      %v924 = vsub.s32 %v921, %v923
      %v925 = vrot.slane %v788, %v924
      %vm926 = vcmask 654912
      %v927 = vsel %vm926, %v925, %v920
      %v928 = vadd.s32 %v860, 4294967216
      %v929 = vlaneseq
      %v930 = vshrl.u32 %v929, 7
      %v931 = vsub.s32 %v928, %v930
      %v932 = vrot.slane %v789, %v931
      %vm933 = vcmask 720512
      %v934 = vsel %vm933, %v932, %v927
      %v935 = vadd.s32 %v860, 4294967208
      %v936 = vlaneseq
      %v937 = vshrl.u32 %v936, 7
      %v938 = vsub.s32 %v935, %v937
      %v939 = vrot.slane %v790, %v938
      %vm940 = vcmask 786112
      %v941 = vsel %vm940, %v939, %v934
      %v942 = vadd.s32 %v860, 4294967200
      %v943 = vlaneseq
      %v944 = vshrl.u32 %v943, 7
      %v945 = vsub.s32 %v942, %v944
      %v946 = vrot.slane %v791, %v945
      %vm947 = vcmask 851712
      %v948 = vsel %vm947, %v946, %v941
      %v949 = vadd.s32 %v860, 4294967192
      %v950 = vlaneseq
      %v951 = vshrl.u32 %v950, 7
      %v952 = vsub.s32 %v949, %v951
      %v953 = vrot.slane %v792, %v952
      %vm954 = vcmask 917312
      %v955 = vsel %vm954, %v953, %v948
      %v956 = vadd.s32 %v860, 4294967184
      %v957 = vlaneseq
      %v958 = vshrl.u32 %v957, 7
      %v959 = vsub.s32 %v956, %v958
      %v960 = vrot.slane %v793, %v959
      %vm961 = vcmask 982912
      %v962 = vsel %vm961, %v960, %v955
      %v963 = vadd.s32 %v860, 4294967176
      %v964 = vlaneseq
      %v965 = vshrl.u32 %v964, 7
      %v966 = vsub.s32 %v963, %v965
      %v967 = vrot.slane %v794, %v966
      %vm968 = vcmask 1048512
      %v969 = vsel %vm968, %v967, %v962
      %v987 = vlaneseq
      %v988 = vshrl.u32 %v987, 7
      %v989 = vsub.s32 %v860, %v988
      %v990 = vrot.slane %v811, %v989
      %v991 = vlaneseq
      %v992 = vshrl.u32 %v991, 7
      %v993 = vsub.s32 %v865, %v992
      %v994 = vrot.slane %v812, %v993
      %v995 = vsel %vm870, %v994, %v990
      %v996 = vlaneseq
      %v997 = vshrl.u32 %v996, 7
      %v998 = vsub.s32 %v872, %v997
      %v999 = vrot.slane %v813, %v998
      %v1000 = vsel %vm877, %v999, %v995
      %v1001 = vlaneseq
      %v1002 = vshrl.u32 %v1001, 7
      %v1003 = vsub.s32 %v879, %v1002
      %v1004 = vrot.slane %v814, %v1003
      %v1005 = vsel %vm884, %v1004, %v1000
      %v1006 = vlaneseq
      %v1007 = vshrl.u32 %v1006, 7
      %v1008 = vsub.s32 %v886, %v1007
      %v1009 = vrot.slane %v815, %v1008
      %v1010 = vsel %vm891, %v1009, %v1005
      %v1011 = vlaneseq
      %v1012 = vshrl.u32 %v1011, 7
      %v1013 = vsub.s32 %v893, %v1012
      %v1014 = vrot.slane %v816, %v1013
      %v1015 = vsel %vm898, %v1014, %v1010
      %v1016 = vlaneseq
      %v1017 = vshrl.u32 %v1016, 7
      %v1018 = vsub.s32 %v900, %v1017
      %v1019 = vrot.slane %v817, %v1018
      %v1020 = vsel %vm905, %v1019, %v1015
      %v1021 = vlaneseq
      %v1022 = vshrl.u32 %v1021, 7
      %v1023 = vsub.s32 %v907, %v1022
      %v1024 = vrot.slane %v818, %v1023
      %v1025 = vsel %vm912, %v1024, %v1020
      %v1026 = vlaneseq
      %v1027 = vshrl.u32 %v1026, 7
      %v1028 = vsub.s32 %v914, %v1027
      %v1029 = vrot.slane %v819, %v1028
      %v1030 = vsel %vm919, %v1029, %v1025
      %v1031 = vlaneseq
      %v1032 = vshrl.u32 %v1031, 7
      %v1033 = vsub.s32 %v921, %v1032
      %v1034 = vrot.slane %v820, %v1033
      %v1035 = vsel %vm926, %v1034, %v1030
      %v1036 = vlaneseq
      %v1037 = vshrl.u32 %v1036, 7
      %v1038 = vsub.s32 %v928, %v1037
      %v1039 = vrot.slane %v821, %v1038
      %v1040 = vsel %vm933, %v1039, %v1035
      %v1041 = vlaneseq
      %v1042 = vshrl.u32 %v1041, 7
      %v1043 = vsub.s32 %v935, %v1042
      %v1044 = vrot.slane %v822, %v1043
      %v1045 = vsel %vm940, %v1044, %v1040
      %v1046 = vlaneseq
      %v1047 = vshrl.u32 %v1046, 7
      %v1048 = vsub.s32 %v942, %v1047
      %v1049 = vrot.slane %v823, %v1048
      %v1050 = vsel %vm947, %v1049, %v1045
      %v1051 = vlaneseq
      %v1052 = vshrl.u32 %v1051, 7
      %v1053 = vsub.s32 %v949, %v1052
      %v1054 = vrot.slane %v824, %v1053
      %v1055 = vsel %vm954, %v1054, %v1050
      %v1056 = vlaneseq
      %v1057 = vshrl.u32 %v1056, 7
      %v1058 = vsub.s32 %v956, %v1057
      %v1059 = vrot.slane %v825, %v1058
      %v1060 = vsel %vm961, %v1059, %v1055
      %v1061 = vlaneseq
      %v1062 = vshrl.u32 %v1061, 7
      %v1063 = vsub.s32 %v963, %v1062
      %v1064 = vrot.slane %v826, %v1063
      %v1065 = vsel %vm968, %v1064, %v1060
      %v1083 = vlaneseq
      %v1084 = vshrl.u32 %v1083, 7
      %v1085 = vsub.s32 %v860, %v1084
      %v1086 = vrot.slane %v827, %v1085
      %v1087 = vlaneseq
      %v1088 = vshrl.u32 %v1087, 7
      %v1089 = vsub.s32 %v865, %v1088
      %v1090 = vrot.slane %v828, %v1089
      %v1091 = vsel %vm870, %v1090, %v1086
      %v1092 = vlaneseq
      %v1093 = vshrl.u32 %v1092, 7
      %v1094 = vsub.s32 %v872, %v1093
      %v1095 = vrot.slane %v829, %v1094
      %v1096 = vsel %vm877, %v1095, %v1091
      %v1097 = vlaneseq
      %v1098 = vshrl.u32 %v1097, 7
      %v1099 = vsub.s32 %v879, %v1098
      %v1100 = vrot.slane %v830, %v1099
      %v1101 = vsel %vm884, %v1100, %v1096
      %v1102 = vlaneseq
      %v1103 = vshrl.u32 %v1102, 7
      %v1104 = vsub.s32 %v886, %v1103
      %v1105 = vrot.slane %v831, %v1104
      %v1106 = vsel %vm891, %v1105, %v1101
      %v1107 = vlaneseq
      %v1108 = vshrl.u32 %v1107, 7
      %v1109 = vsub.s32 %v893, %v1108
      %v1110 = vrot.slane %v832, %v1109
      %v1111 = vsel %vm898, %v1110, %v1106
      %v1112 = vlaneseq
      %v1113 = vshrl.u32 %v1112, 7
      %v1114 = vsub.s32 %v900, %v1113
      %v1115 = vrot.slane %v833, %v1114
      %v1116 = vsel %vm905, %v1115, %v1111
      %v1117 = vlaneseq
      %v1118 = vshrl.u32 %v1117, 7
      %v1119 = vsub.s32 %v907, %v1118
      %v1120 = vrot.slane %v834, %v1119
      %v1121 = vsel %vm912, %v1120, %v1116
      %v1122 = vlaneseq
      %v1123 = vshrl.u32 %v1122, 7
      %v1124 = vsub.s32 %v914, %v1123
      %v1125 = vrot.slane %v835, %v1124
      %v1126 = vsel %vm919, %v1125, %v1121
      %v1127 = vlaneseq
      %v1128 = vshrl.u32 %v1127, 7
      %v1129 = vsub.s32 %v921, %v1128
      %v1130 = vrot.slane %v836, %v1129
      %v1131 = vsel %vm926, %v1130, %v1126
      %v1132 = vlaneseq
      %v1133 = vshrl.u32 %v1132, 7
      %v1134 = vsub.s32 %v928, %v1133
      %v1135 = vrot.slane %v837, %v1134
      %v1136 = vsel %vm933, %v1135, %v1131
      %v1137 = vlaneseq
      %v1138 = vshrl.u32 %v1137, 7
      %v1139 = vsub.s32 %v935, %v1138
      %v1140 = vrot.slane %v838, %v1139
      %v1141 = vsel %vm940, %v1140, %v1136
      %v1142 = vlaneseq
      %v1143 = vshrl.u32 %v1142, 7
      %v1144 = vsub.s32 %v942, %v1143
      %v1145 = vrot.slane %v839, %v1144
      %v1146 = vsel %vm947, %v1145, %v1141
      %v1147 = vlaneseq
      %v1148 = vshrl.u32 %v1147, 7
      %v1149 = vsub.s32 %v949, %v1148
      %v1150 = vrot.slane %v840, %v1149
      %v1151 = vsel %vm954, %v1150, %v1146
      %v1152 = vlaneseq
      %v1153 = vshrl.u32 %v1152, 7
      %v1154 = vsub.s32 %v956, %v1153
      %v1155 = vrot.slane %v841, %v1154
      %v1156 = vsel %vm961, %v1155, %v1151
      %v1157 = vlaneseq
      %v1158 = vshrl.u32 %v1157, 7
      %v1159 = vsub.s32 %v963, %v1158
      %v1160 = vrot.slane %v842, %v1159
      %v1161 = vsel %vm968, %v1160, %v1156
      %vm1163 = vcmask 1040384
      %v1164 = vsel %vm1163, %v969, %v1065
      %vm1165 = vcmask 1041408
      %v1166 = vsel %vm1165, %v1164, %v1161
      %1167 = vst [vmem:[%s241] sm:$0x7] %v1166
      %p1168 = scmp.lt.s32.totalorder %s15, 1
      %s1169 = scalar_select %p1168, %s15, 1
      %s1170 = smul.addr %s1169, 4
      %s1171 = scalar_lea.vmem %s4, %s1170
      // Predicated region
      $region37: #{margin_mse_loss.1} parent=35 // pred_check
        %p1172 = pneg %p132
      $region38: #{margin_mse_loss.1} parent=35 // pred_check_branch
        %1174 = sbr.rel (%p1172) target = $region40
      $region39: #{margin_mse_loss.1} parent=35 // pred_region
        _
      $region40: #{margin_mse_loss.1} parent=35 // pred_fallthru
        _
    $region36: #{margin_mse_loss.1} parent=5 // pred_fallthru
      _
    %p1175 = scmp.le.s32.totalorder 2, %s10
    // Predicated region
    $region41: #{margin_mse_loss.1} parent=5 // pred_check
      %p1176 = pneg %p1175
    $region42: #{margin_mse_loss.1} parent=5 // pred_check_branch
      %1178 = sbr.rel (%p1176) target = $region44
    $region43: #{margin_mse_loss.1} parent=5 // pred_region
      %s1179 = ssub.s32 %s10, 2
      // Predicated region
      $region45: #{margin_mse_loss.1} parent=43 // pred_check
        %p1180 = pneg %p138
      $region46: #{margin_mse_loss.1} parent=43 // pred_check_branch
        %1182 = sbr.rel (%p1180) target = $region48
      $region47: #{margin_mse_loss.1} parent=43 // pred_region
        %p1183 = scmp.lt.s32.totalorder %s16, 1
        %s1184 = scalar_select %p1183, %s16, 1
        %s1185 = smul.addr %s1184, 4
        %s1186 = scalar_lea.vmem %s4, %s1185
      $region48: #{margin_mse_loss.1} parent=43 // pred_fallthru
        _
    $region44: #{margin_mse_loss.1} parent=5 // pred_fallthru
      _
  $region6: #{margin_mse_loss.1} parent=0 // loop_footer
    %s14 = sadd.s32 1, %s10
  $region7: #{margin_mse_loss.1} parent=0 // loop_footer_branch
    %9 = sbr.rel target = $region3
  $region8: #{margin_mse_loss.1} parent=0 // loop_exit
    _

</llo_original>
